<compile_context>
chip_gen: v6e
topology: v6e:2x2x1
jax: 0.10.0
libtpu: 0.0.40
codegen_flags: <defaults>
</compile_context>

<pallas_src>
import functools
import math
from typing import NamedTuple

import jax
import jax.numpy as jnp
from jax.experimental import pallas as pl
from jax.experimental.pallas import tpu as pltpu


# ----------------------------------------------------------------------------
# small helpers
# ----------------------------------------------------------------------------

def _round_up(x, m):
    return ((x + m - 1) // m) * m


def _cdiv(a, b):
    return -(-a // b)


def _device_kind():
    try:
        return jax.devices()[0].device_kind.lower()
    except Exception:  # no devices / unusual backend: fall back to generic path
        return ""


def _choose_tile_b(B, kind):
    """Batch tile: multiple of 16 (bf16 sublanes), minimal zero padding,
    and >= 2 grid steps on v7x (2 TensorCores) when B is large."""
    if B <= 16:
        return 16
    max_tile = 256 if "v7" in kind else 512          # 64 MiB vs 128 MiB VMEM
    n_steps = max(1, _cdiv(B, max_tile))
    if "v7" in kind and n_steps < 2 and B > 128:
        n_steps = 2                                   # use both TCs on v7x
    return max(16, _round_up(_cdiv(B, n_steps), 16))


def _choose_slab(d_inner, max_slab=512):
    """Largest 128-multiple divisor of d_inner that is <= max_slab."""
    if d_inner <= max_slab:
        return d_inner
    for s in range(max_slab, 0, -128):
        if d_inner % s == 0:
            return s
    return d_inner


def _vmem_limit_bytes(tile_b, d_in, d_inner, c_pad, d_slab, out_dtype,
                      single_buffer_weights, kind):
    """Working-set estimate with headroom, clamped to a safe scoped limit."""
    wbuf = 1 if single_buffer_weights else 2
    weights = wbuf * (d_in * d_inner + d_inner * c_pad) * 2   # bf16 W1 + W2
    biases = wbuf * (d_inner + c_pad) * 4                      # <= f32
    x_tiles = 2 * tile_b * d_in * 2                            # double-buffered bf16
    o_tiles = 2 * tile_b * c_pad * jnp.dtype(out_dtype).itemsize
    interm = tile_b * d_slab * 4 + tile_b * c_pad * 4          # f32 slab + accumulator
    est = weights + biases + x_tiles + o_tiles + interm
    cap = (48 << 20) if "v7" in kind else (64 << 20)
    return max(32 << 20, min(cap, int(est * 1.5) + (4 << 20)))


# ----------------------------------------------------------------------------
# one-time capability probe: is pl.Buffered(1) (single-buffered resident
# weights) accepted by this jax/Mosaic build?  Only the probe compile is
# guarded; real kernel launches never swallow errors.
# ----------------------------------------------------------------------------

_BUFFERED_ONE_SUPPORTED = None


def _buffered_one_supported():
    global _BUFFERED_ONE_SUPPORTED
    if _BUFFERED_ONE_SUPPORTED is not None:
        return _BUFFERED_ONE_SUPPORTED

    def _probe_kernel(x_ref, w_ref, o_ref):
        o_ref[...] = x_ref[...] + w_ref[...]

    try:
        probe = pl.pallas_call(
            _probe_kernel,
            out_shape=jax.ShapeDtypeStruct((32, 128), jnp.float32),
            grid_spec=pltpu.PrefetchScalarGridSpec(
                num_scalar_prefetch=0,
                grid=(2,),
                in_specs=[
                    pl.BlockSpec((16, 128), lambda i: (i, 0)),
                    pl.BlockSpec((16, 128), lambda i: (0, 0),
                                 pipeline_mode=pl.Buffered(1)),
                ],
                out_specs=pl.BlockSpec((16, 128), lambda i: (i, 0)),
            ),
        )
        jax.jit(probe).lower(
            jax.ShapeDtypeStruct((32, 128), jnp.float32),
            jax.ShapeDtypeStruct((16, 128), jnp.float32),
        ).compile()
        _BUFFERED_ONE_SUPPORTED = True
    except Exception:
        _BUFFERED_ONE_SUPPORTED = False
    return _BUFFERED_ONE_SUPPORTED


# ----------------------------------------------------------------------------
# kernel
# ----------------------------------------------------------------------------

def _head_kernel(x_ref, w1_ref, b1_ref, w2_ref, b2_ref, o_ref, *,
                 d_slab, act_dtype):
    # x_ref : (TB, D_in)        bf16 batch tile (streamed)
    # w1_ref: (D_in, D_inner)   bf16, resident across the grid
    # b1_ref: (1, D_inner)      act_dtype (bf16 on v6e/v7x, f32 on v5e)
    # w2_ref: (D_inner, C_pad)  bf16, resident (classes padded to 128 lanes)
    # b2_ref: (1, C_pad)        f32
    # o_ref : (TB, C_pad)       lane-dense output tile
    tb = x_ref.shape[0]
    d_inner = w1_ref.shape[1]
    c_pad = w2_ref.shape[1]
    n_slabs = d_inner // d_slab          # static; d_slab divides d_inner

    y = jnp.zeros((tb, c_pad), jnp.float32)
    for s in range(n_slabs):             # static slab loop over d_inner
        lo = s * d_slab
        h = jnp.dot(x_ref[...], w1_ref[:, lo:lo + d_slab],
                    preferred_element_type=jnp.float32)
        if act_dtype != jnp.float32:
            h = h.astype(act_dtype)       # bf16 VPU add + bf16 EUP tanh (v6e/v7x)
        h = jnp.tanh(h + b1_ref[:, lo:lo + d_slab])
        h = h.astype(w2_ref.dtype)        # bf16 for the second MXU pass
        y = y + jnp.dot(h, w2_ref[lo:lo + d_slab, :],
                        preferred_element_type=jnp.float32)

    o_ref[...] = (y + b2_ref[...]).astype(o_ref.dtype)


def _launch(x, w1, b1, w2, b2, out_dtype, tile_b, d_slab, act_dtype,
            vmem_limit, single_buffer_weights):
    b_pad, d_in = x.shape
    d_inner = w1.shape[1]
    c_pad = w2.shape[1]

    # Resident operands: double-buffering is pure VMEM waste (constant index_map).
    w_kw = dict(pipeline_mode=pl.Buffered(1)) if single_buffer_weights else {}

    kernel = functools.partial(_head_kernel, d_slab=d_slab, act_dtype=act_dtype)
    grid = (b_pad // tile_b,)

    return pl.pallas_call(
        kernel,
        out_shape=jax.ShapeDtypeStruct((b_pad, c_pad), out_dtype),
        grid_spec=pltpu.PrefetchScalarGridSpec(
            num_scalar_prefetch=0,
            grid=grid,
            in_specs=[
                pl.BlockSpec((tile_b, d_in), lambda i: (i, 0)),            # x (streamed)
                pl.BlockSpec((d_in, d_inner), lambda i: (0, 0), **w_kw),   # W1 (resident)
                pl.BlockSpec((1, d_inner), lambda i: (0, 0), **w_kw),      # b1
                pl.BlockSpec((d_inner, c_pad), lambda i: (0, 0), **w_kw),  # W2 (resident)
                pl.BlockSpec((1, c_pad), lambda i: (0, 0), **w_kw),        # b2
            ],
            out_specs=pl.BlockSpec((tile_b, c_pad), lambda i: (i, 0)),     # lane-dense
        ),
        compiler_params=pltpu.CompilerParams(
            dimension_semantics=("parallel",),
            vmem_limit_bytes=vmem_limit,
        ),
    )(x, w1, b1, w2, b2)


# ----------------------------------------------------------------------------
# params preparation (done ONCE at model load, not per call)
# ----------------------------------------------------------------------------

class HeadParams(NamedTuple):
    w1: jax.Array          # (d_in, d_inner)  compute dtype (bf16)
    b1: jax.Array          # (1, d_inner)     activation dtype (bf16 / f32)
    w2: jax.Array          # (d_inner, c_pad) compute dtype, classes padded to 128
    b2: jax.Array          # (1, c_pad)       f32, classes padded to 128
    num_classes: int       # true (unpadded) class count


def prepare_head_params(w1, b1, w2, b2, *, compute_dtype=jnp.bfloat16,
                        act_dtype=None):
    """Pre-cast / pre-pad weights once so every forward call streams only x.
    Weights are stored [in, out] (pre-transposed vs torch.nn.Linear)."""
    d_in, d_inner = w1.shape
    num_classes = w2.shape[-1]
    kind = _device_kind()
    if act_dtype is None:
        # v5e has no bf16 VPU/EUP -> keep bias+tanh in f32 there.
        act_dtype = jnp.float32 if "v5" in kind else compute_dtype

    b1 = jnp.asarray(b1).reshape(1, d_inner)
    b2 = jnp.asarray(b2).reshape(1, num_classes)

    # Lane-dense output: pad class dim to a multiple of 128 (zero columns).
    c_pad = _round_up(num_classes, 128)
    if c_pad != num_classes:
        w2 = jnp.pad(w2, ((0, 0), (0, c_pad - num_classes)))
        b2 = jnp.pad(b2, ((0, 0), (0, c_pad - num_classes)))

    return HeadParams(
        w1=jnp.asarray(w1).astype(compute_dtype),
        b1=b1.astype(act_dtype),
        w2=jnp.asarray(w2).astype(compute_dtype),
        b2=b2.astype(jnp.float32),
        num_classes=num_classes,
    )


# ----------------------------------------------------------------------------
# forward
# ----------------------------------------------------------------------------

def mbart_classification_head(hidden_states, params: HeadParams, *, tile_b=None):
    """hidden_states: [B, input_dim]; params from prepare_head_params().
    Returns [B, num_classes] in hidden_states.dtype (inference-mode dropout)."""
    B, d_in = hidden_states.shape
    d_inner = params.w1.shape[1]
    c_pad = params.w2.shape[1]
    out_dtype = hidden_states.dtype
    kind = _device_kind()

    if tile_b is None:
        tile_b = _choose_tile_b(B, kind)
    else:
        tile_b = max(16, _round_up(tile_b, 16))   # bf16 sublane packing = 16 rows
    b_pad = _round_up(B, tile_b)

    x = hidden_states.astype(params.w1.dtype)
    if b_pad != B:
        x = jnp.pad(x, ((0, b_pad - B), (0, 0)))

    d_slab = _choose_slab(d_inner)
    act_dtype = params.b1.dtype
    single_w = _buffered_one_supported()
    vmem_limit = _vmem_limit_bytes(tile_b, d_in, d_inner, c_pad, d_slab,
                                   out_dtype, single_w, kind)

    out = _launch(x, params.w1, params.b1, params.w2, params.b2,
                  out_dtype, tile_b, d_slab, act_dtype, vmem_limit, single_w)
    return out[:B, :params.num_classes]


# ----------------------------------------------------------------------------
# deterministic nn.Linear-style init + self-test
# ----------------------------------------------------------------------------

def init_params(key, input_dim, inner_dim, num_classes, dtype=jnp.float32):
    """Uniform +-1/sqrt(fan_in) init, weights stored [in, out]."""
    k1, k2, k3, k4 = jax.random.split(key, 4)
    bound1 = 1.0 / math.sqrt(input_dim)
    bound2 = 1.0 / math.sqrt(inner_dim)
    w1 = jax.random.uniform(k1, (input_dim, inner_dim), dtype, -bound1, bound1)
    b1 = jax.random.uniform(k2, (1, inner_dim), dtype, -bound1, bound1)
    w2 = jax.random.uniform(k3, (inner_dim, num_classes), dtype, -bound2, bound2)
    b2 = jax.random.uniform(k4, (1, num_classes), dtype, -bound2, bound2)
    return w1, b1, w2, b2


if __name__ == "__main__":
    key = jax.random.PRNGKey(0)
    kx, kp = jax.random.split(key)

    batch, input_dim, inner_dim, num_classes = 16, 32, 64, 4
    # pooler_dropout = 0.0 -> inference mode, dropout is identity

    hidden_states = jax.random.normal(kx, (batch, input_dim), jnp.float32)
    w1, b1, w2, b2 = init_params(kp, input_dim, inner_dim, num_classes)

    params = prepare_head_params(w1, b1, w2, b2)      # one-time cast/pad
    out = mbart_classification_head(hidden_states, params)
    out = jax.block_until_ready(out)

    # f32 reference; kernel matmuls run in bf16 with f32 accumulation
    # (and bf16 tanh on v6e/v7x), so tolerance is loosened accordingly.
    ref = jnp.tanh(hidden_states @ w1 + b1) @ w2 + b2
    assert out.shape == (batch, num_classes)
    assert jnp.allclose(out, ref, atol=5e-2, rtol=5e-2), "mismatch vs reference"

    print("KERNEL_OK")
</pallas_src>

<mosaic_0001>
module attributes {stable_mosaic.version = 11 : i64} {
  func.func @_head_kernel(%arg0: i32, %arg1: memref<16x32xbf16, #tpu.memory_space<vmem>>, %arg2: memref<32x64xbf16, #tpu.memory_space<vmem>>, %arg3: memref<1x64xbf16, #tpu.memory_space<vmem>>, %arg4: memref<64x128xbf16, #tpu.memory_space<vmem>>, %arg5: memref<1x128xf32, #tpu.memory_space<vmem>>, %arg6: memref<16x128xf32, #tpu.memory_space<vmem>>) attributes {dimension_semantics = [#tpu.dimension_semantics<parallel>], iteration_bounds = array<i64: 1>, scalar_prefetch = 0 : i64, scratch_operands = 0 : i64, tpu.core_type = #tpu.core_type<tc>, window_params = [{transform_indices = @transform_0, window_bounds = array<i64: 16, 32>}, {pipeline_mode = #tpu.pipeline_mode<synchronous>, transform_indices = @transform_1, window_bounds = array<i64: 32, 64>}, {pipeline_mode = #tpu.pipeline_mode<synchronous>, transform_indices = @transform_2, window_bounds = array<i64: 1, 64>}, {pipeline_mode = #tpu.pipeline_mode<synchronous>, transform_indices = @transform_3, window_bounds = array<i64: 64, 128>}, {pipeline_mode = #tpu.pipeline_mode<synchronous>, transform_indices = @transform_4, window_bounds = array<i64: 1, 128>}, {transform_indices = @transform_5, window_bounds = array<i64: 16, 128>}]} {
    %cst = arith.constant 0.000000e+00 : f32
    %0 = vector.broadcast %cst : f32 to vector<16x128xf32>
    %c0 = arith.constant 0 : index
    %c0_0 = arith.constant 0 : index
    %1 = vector.load %arg1[%c0, %c0_0] : memref<16x32xbf16, #tpu.memory_space<vmem>>, vector<16x32xbf16>
    %c0_1 = arith.constant 0 : index
    %c0_2 = arith.constant 0 : index
    %2 = vector.load %arg2[%c0_1, %c0_2] : memref<32x64xbf16, #tpu.memory_space<vmem>>, vector<32x64xbf16>
    %cst_3 = arith.constant dense<0.000000e+00> : vector<16x64xf32>
    %3 = tpu.matmul %1, %2, %cst_3 {dimension_numbers = #tpu.dot_dimension_numbers<[1], [0], [0], [1], [0, 0, 1, 1], [], []>} : vector<16x32xbf16>, vector<32x64xbf16>, vector<16x64xf32> -> vector<16x64xf32>
    %4 = arith.truncf %3 : vector<16x64xf32> to vector<16x64xbf16>
    %c0_4 = arith.constant 0 : index
    %c0_5 = arith.constant 0 : index
    %5 = vector.load %arg3[%c0_4, %c0_5] : memref<1x64xbf16, #tpu.memory_space<vmem>>, vector<1x64xbf16>
    %6 = vector.broadcast %5 : vector<1x64xbf16> to vector<16x64xbf16>
    %7 = arith.addf %4, %6 : vector<16x64xbf16>
    %8 = math.tanh %7 : vector<16x64xbf16>
    %c0_6 = arith.constant 0 : index
    %c0_7 = arith.constant 0 : index
    %9 = vector.load %arg4[%c0_6, %c0_7] : memref<64x128xbf16, #tpu.memory_space<vmem>>, vector<64x128xbf16>
    %cst_8 = arith.constant dense<0.000000e+00> : vector<16x128xf32>
    %10 = tpu.matmul %8, %9, %cst_8 {dimension_numbers = #tpu.dot_dimension_numbers<[1], [0], [0], [1], [0, 0, 1, 1], [], []>} : vector<16x64xbf16>, vector<64x128xbf16>, vector<16x128xf32> -> vector<16x128xf32>
    %11 = arith.addf %0, %10 : vector<16x128xf32>
    %c0_9 = arith.constant 0 : index
    %c0_10 = arith.constant 0 : index
    %12 = vector.load %arg5[%c0_9, %c0_10] : memref<1x128xf32, #tpu.memory_space<vmem>>, vector<1x128xf32>
    %13 = vector.broadcast %12 : vector<1x128xf32> to vector<16x128xf32>
    %14 = arith.addf %11, %13 : vector<16x128xf32>
    %c0_11 = arith.constant 0 : index
    %c0_12 = arith.constant 0 : index
    %15 = vector.load %arg6[%c0_11, %c0_12] : memref<16x128xf32, #tpu.memory_space<vmem>>, vector<16x128xf32>
    tpu.vector_store %arg6[%c0_11, %c0_12], %14 {strides = array<i32>} : memref<16x128xf32, #tpu.memory_space<vmem>>, vector<16x128xf32>,
    return
  }
  func.func @transform_0(%arg0: i32) -> (i32, i32) {
    %c0_i32 = arith.constant 0 : i32
    %c0_i32_0 = arith.constant 0 : i32
    return %arg0, %c0_i32 : i32, i32
  }
  func.func @transform_1(%arg0: i32) -> (i32, i32) {
    %c0_i32 = arith.constant 0 : i32
    %c0_i32_0 = arith.constant 0 : i32
    %c0_i32_1 = arith.constant 0 : i32
    return %c0_i32, %c0_i32_0 : i32, i32
  }
  func.func @transform_2(%arg0: i32) -> (i32, i32) {
    %c0_i32 = arith.constant 0 : i32
    %c0_i32_0 = arith.constant 0 : i32
    %c0_i32_1 = arith.constant 0 : i32
    return %c0_i32, %c0_i32_0 : i32, i32
  }
  func.func @transform_3(%arg0: i32) -> (i32, i32) {
    %c0_i32 = arith.constant 0 : i32
    %c0_i32_0 = arith.constant 0 : i32
    %c0_i32_1 = arith.constant 0 : i32
    return %c0_i32, %c0_i32_0 : i32, i32
  }
  func.func @transform_4(%arg0: i32) -> (i32, i32) {
    %c0_i32 = arith.constant 0 : i32
    %c0_i32_0 = arith.constant 0 : i32
    %c0_i32_1 = arith.constant 0 : i32
    return %c0_i32, %c0_i32_0 : i32, i32
  }
  func.func @transform_5(%arg0: i32) -> (i32, i32) {
    %c0_i32 = arith.constant 0 : i32
    %c0_i32_0 = arith.constant 0 : i32
    return %arg0, %c0_i32 : i32, i32
  }
}

</mosaic_0001>

<llo_original>
// kernel: tpu_custom_call.1
$region0: #{tpu_custom_call.1}
  #allocation0 [shape = 'u32[]', space=smem, size = 0x4, offset = 0x4, fixed_abs, tag = 'smem constant byte address 0x4 - core index']
  #allocation1 [shape = 'u32[144,128]{1,0:T(1,128)}', space=vmem, size = 0x12000, scoped, tag = 'internal scratch']
  %s0 = inlined_call_operand.hbm [shape: bf16[16,32], index: 0, kind: input, shape index: {}]
  %s1 = inlined_call_operand.hbm [shape: bf16[32,64], index: 1, kind: input, shape index: {}]
  %s2 = inlined_call_operand.vmem [shape: bf16[1,64], index: 2, kind: input, shape index: {}]
  %s3 = inlined_call_operand.hbm [shape: bf16[64,128], index: 3, kind: input, shape index: {}]
  %s4 = inlined_call_operand.vmem [shape: f32[1,128], index: 4, kind: input, shape index: {}]
  %s5 = inlined_call_operand.hbm [shape: f32[16,128], index: 5, kind: output, shape index: {}]
  %s6 = sld [smem:[#allocation0]]
  $region42: #{tpu_custom_call.1} parent=0
    _
  %s8 = ssub.s32 1, %s6
  %s9 = scalar_select 0, %s8, %s6
  $region1: #{tpu_custom_call.1} parent=0
    #allocation2 [shape = 'u8[4096]{0}', space=vmem, size = 0x1000, scoped, tag = 'input window, operand 0, single buffered']
    #allocation3 [shape = 's32[1]{0}', space=sflag, size = 0x4, scoped, tag = 'scoped memory for tpu_custom_call.1']
    #allocation4 [shape = 's32[1]{0}', space=sflag, size = 0x4, scoped, tag = 'scoped memory for tpu_custom_call.1']
    #allocation5 [shape = 'u8[8192]{0}', space=vmem, size = 0x2000, scoped, tag = 'input window, operand 1, single buffered']
    #allocation6 [shape = 's32[1]{0}', space=sflag, size = 0x4, scoped, tag = 'scoped memory for tpu_custom_call.1']
    #allocation7 [shape = 'u8[16384]{0}', space=vmem, size = 0x4000, scoped, tag = 'input window, operand 3, single buffered']
    #allocation8 [shape = 'u8[8192]{0}', space=vmem, size = 0x2000, scoped, tag = 'output window, operand 0, single buffered']
    %10 = vsyncpa [#allocation3], 0
    %11 = vsyncpa [#allocation6], 0
    %12 = vsyncpa [#allocation4], 0
    // Predicated region
    $region2: #{tpu_custom_call.1} parent=1 // pred_check
      _
    $region3: #{tpu_custom_call.1} parent=1 // pred_check_branch
      %14 = sbr.rel (0) target = $region5
    $region4: #{tpu_custom_call.1} parent=1 // pred_region
      %s16 = ssub.s32 128, 128
      %17 = vsyncadd [#allocation3], %s16
      %s18 = sshll.u32 [#allocation2], 4
      %s19 = int_to_ptr.vmem [resolvable:$true] %s18
      %24 = dma.hbm_to_vmem [thread:$0]  %s0, 128, %s19, [#allocation3], 64, 64, 4
    $region5: #{tpu_custom_call.1} parent=1 // pred_fallthru
      _
    // Predicated region
    $region6: #{tpu_custom_call.1} parent=1 // pred_check
      _
    $region7: #{tpu_custom_call.1} parent=1 // pred_check_branch
      %26 = sbr.rel (0) target = $region9
    $region8: #{tpu_custom_call.1} parent=1 // pred_region
      %s28 = ssub.s32 256, 256
      %29 = vsyncadd [#allocation6], %s28
      %s30 = sshll.u32 [#allocation5], 4
      %s31 = int_to_ptr.vmem [resolvable:$true] %s30
      %36 = dma.hbm_to_vmem [thread:$0]  %s1, 256, %s31, [#allocation6], 64, 64, 4
    $region9: #{tpu_custom_call.1} parent=1 // pred_fallthru
      _
    // Predicated region
    $region10: #{tpu_custom_call.1} parent=1 // pred_check
      _
    $region11: #{tpu_custom_call.1} parent=1 // pred_check_branch
      %38 = sbr.rel (0) target = $region13
    $region12: #{tpu_custom_call.1} parent=1 // pred_region
      _
    $region13: #{tpu_custom_call.1} parent=1 // pred_fallthru
      _
    // Predicated region
    $region14: #{tpu_custom_call.1} parent=1 // pred_check
      _
    $region15: #{tpu_custom_call.1} parent=1 // pred_check_branch
      %40 = sbr.rel (0) target = $region17
    $region16: #{tpu_custom_call.1} parent=1 // pred_region
      %s42 = ssub.s32 512, 512
      %43 = vsyncadd [#allocation6], %s42
      %s44 = sshll.u32 [#allocation7], 4
      %s45 = int_to_ptr.vmem [resolvable:$true] %s44
      %50 = dma.hbm_to_vmem [thread:$0]  %s3, 512, %s45, [#allocation6], 64, 64, 4
    $region17: #{tpu_custom_call.1} parent=1 // pred_fallthru
      _
    // Predicated region
    $region18: #{tpu_custom_call.1} parent=1 // pred_check
      _
    $region19: #{tpu_custom_call.1} parent=1 // pred_check_branch
      %52 = sbr.rel (0) target = $region21
    $region20: #{tpu_custom_call.1} parent=1 // pred_region
      _
    $region21: #{tpu_custom_call.1} parent=1 // pred_fallthru
      _
    // Predicated region
    $region22: #{tpu_custom_call.1} parent=1 // pred_check
      _
    $region23: #{tpu_custom_call.1} parent=1 // pred_check_branch
      %54 = sbr.rel (0) target = $region25
    $region24: #{tpu_custom_call.1} parent=1 // pred_region
      %55 = dma.done [#allocation3], 128
    $region25: #{tpu_custom_call.1} parent=1 // pred_fallthru
      _
    // Predicated region
    $region26: #{tpu_custom_call.1} parent=1 // pred_check
      _
    $region27: #{tpu_custom_call.1} parent=1 // pred_check_branch
      %57 = sbr.rel (0) target = $region29
    $region28: #{tpu_custom_call.1} parent=1 // pred_region
      %58 = dma.done [#allocation6], 256
    $region29: #{tpu_custom_call.1} parent=1 // pred_fallthru
      _
    // Predicated region
    $region30: #{tpu_custom_call.1} parent=1 // pred_check
      _
    $region31: #{tpu_custom_call.1} parent=1 // pred_check_branch
      %60 = sbr.rel (0) target = $region33
    $region32: #{tpu_custom_call.1} parent=1 // pred_region
      %61 = dma.done [#allocation6], 512
    $region33: #{tpu_custom_call.1} parent=1 // pred_fallthru
      _
    %v63 = vld [vmem:[#allocation2] sm:$0xf]
    %v64 = vld [vmem:[#allocation2 + $0x4] sm:$0xf]
    %v65 = vld [vmem:[#allocation5] sm:$0xf]
    %v66 = vld [vmem:[#allocation5 + $0x4] sm:$0xf]
    %v67 = vld [vmem:[#allocation5 + $0x8] sm:$0xf]
    %v68 = vld [vmem:[#allocation5 + $0xc] sm:$0xf]
    %v71 = vunpack.c.l.b16 %v63
    %v72 = vunpack.c.l.b16 %v64
    %v73 = vpack.c.b16 %v72, %v71
    %v78 = vunpack.c.l.b16 %v65
    %v79 = vunpack.c.l.b16 %v66
    %v80 = vunpack.c.l.b16 %v67
    %v81 = vunpack.c.l.b16 %v68
    %v82 = vpack.c.b16 %v79, %v78
    %v83 = vpack.c.b16 %v81, %v80
    %vm86 = vcmask 261120
    %v88 = vsel %vm86, %v73, 0
    %90 = vmatprep.subr.bf16.mxu0 0
    %91 = vmatpush1.bf16.msra.mxu0 0
    %92 = vmatprep.subr.bf16.mxu0 0
    %93 = vmatpush1.bf16.msra.mxu0 0
    %94 = vmatprep.subr.bf16.mxu0 0
    %95 = vmatpush1.bf16.msra.mxu0 0
    %96 = vmatprep.subr.bf16.mxu0 0
    %97 = vmatpush1.bf16.msra.mxu0 0
    %98 = vmatprep.subr.bf16.mxu0 0
    %99 = vmatpush1.bf16.msra.mxu0 0
    %100 = vmatprep.subr.bf16.mxu0 0
    %101 = vmatpush1.bf16.msra.mxu0 0
    %102 = vmatprep.subr.bf16.mxu0 0
    %103 = vmatpush1.bf16.msra.mxu0 %v83
    %104 = vmatprep.subr.bf16.mxu0 0
    %105 = vmatpush1.bf16.msra.mxu0 %v82
    %106 = vmatprep.subr.bf16.mxu0 0
    %107 = vmatpush2.bf16.msra.mxu0 0
    %108 = vmatprep.subr.bf16.mxu0 0
    %109 = vmatpush2.bf16.msra.mxu0 0
    %110 = vmatprep.subr.bf16.mxu0 0
    %111 = vmatpush2.bf16.msra.mxu0 0
    %112 = vmatprep.subr.bf16.mxu0 0
    %113 = vmatpush2.bf16.msra.mxu0 0
    %114 = vmatprep.subr.bf16.mxu0 0
    %115 = vmatpush2.bf16.msra.mxu0 0
    %116 = vmatprep.subr.bf16.mxu0 0
    %117 = vmatpush2.bf16.msra.mxu0 0
    %118 = vmatprep.subr.bf16.mxu0 0
    %119 = vmatpush2.bf16.msra.mxu0 0
    %120 = vmatprep.subr.bf16.mxu0 0
    %121 = vmatpush2.bf16.msra.mxu0 0
    %122 = vmatprep.mubr.bf16.mxu0 0
    %123 = vmatmul.mubr.bf16.gmra.mxu0 %v88
    %v124 = vpop.f32.mrf.mxu0
    %v125 = vadd.f32 0.0, %v124
    %v126 = vpop.f32.mrf.mxu0
    %v127 = vpop.f32.mrf.mxu0
    %v128 = vadd.f32 0.0, %v127
    %v129 = vpop.f32.mrf.mxu0
    %130 = vdwg.mxu0
    %v131 = vpack.c.bf16 %v128, %v125
    %v132 = vld [vmem:[%s2] sm:$0x1]
    %v134 = vpack.i.b16 %v132, %v132
    %v136 = vlaneseq
    %v137 = vshrl.u32 %v136, 7
    %v138 = vsub.s32 0, %v137
    %v139 = vrot.slane %v134, %v138
    %v140 = vadd.bf16 %v131, %v139
    %v141 = vtanh.bf16.pop %v140
    %v142 = vld [vmem:[#allocation7] sm:$0xf]
    %v143 = vld [vmem:[#allocation7 + $0x4] sm:$0xf]
    %v144 = vld [vmem:[#allocation7 + $0x8] sm:$0xf]
    %v145 = vld [vmem:[#allocation7 + $0xc] sm:$0xf]
    %v146 = vld [vmem:[#allocation7 + $0x10] sm:$0xf]
    %v147 = vld [vmem:[#allocation7 + $0x14] sm:$0xf]
    %v148 = vld [vmem:[#allocation7 + $0x18] sm:$0xf]
    %v149 = vld [vmem:[#allocation7 + $0x1c] sm:$0xf]
    %v150 = vld [vmem:[%s4] sm:$0x1]
    %v152 = vlaneseq
    %v153 = vshrl.u32 %v152, 7
    %v154 = vsub.s32 0, %v153
    %v155 = vrot.slane %v150, %v154
    %v165 = vunpack.c.l.b16 %v142
    %v166 = vunpack.c.l.b16 %v143
    %v167 = vunpack.c.l.b16 %v144
    %v168 = vunpack.c.l.b16 %v145
    %v169 = vunpack.c.l.b16 %v146
    %v170 = vunpack.c.l.b16 %v147
    %v171 = vunpack.c.l.b16 %v148
    %v172 = vunpack.c.l.b16 %v149
    %v173 = vpack.c.b16 %v166, %v165
    %v174 = vpack.c.b16 %v168, %v167
    %v175 = vpack.c.b16 %v170, %v169
    %v176 = vpack.c.b16 %v172, %v171
    %vm181 = vcmask 523264
    %v183 = vsel %vm181, %v141, 0
    %185 = vmatprep.subr.bf16.mxu0 0
    %186 = vmatpush1.bf16.msra.mxu0 0
    %187 = vmatprep.subr.bf16.mxu0 0
    %188 = vmatpush1.bf16.msra.mxu0 0
    %189 = vmatprep.subr.bf16.mxu0 0
    %190 = vmatpush1.bf16.msra.mxu0 0
    %191 = vmatprep.subr.bf16.mxu0 0
    %192 = vmatpush1.bf16.msra.mxu0 0
    %193 = vmatprep.subr.bf16.mxu0 0
    %194 = vmatpush1.bf16.msra.mxu0 %v176
    %195 = vmatprep.subr.bf16.mxu0 0
    %196 = vmatpush1.bf16.msra.mxu0 %v175
    %197 = vmatprep.subr.bf16.mxu0 0
    %198 = vmatpush1.bf16.msra.mxu0 %v174
    %199 = vmatprep.subr.bf16.mxu0 0
    %200 = vmatpush1.bf16.msra.mxu0 %v173
    %201 = vmatprep.subr.bf16.mxu0 0
    %202 = vmatpush2.bf16.msra.mxu0 0
    %203 = vmatprep.subr.bf16.mxu0 0
    %204 = vmatpush2.bf16.msra.mxu0 0
    %205 = vmatprep.subr.bf16.mxu0 0
    %206 = vmatpush2.bf16.msra.mxu0 0
    %207 = vmatprep.subr.bf16.mxu0 0
    %208 = vmatpush2.bf16.msra.mxu0 0
    %209 = vmatprep.subr.bf16.mxu0 0
    %210 = vmatpush2.bf16.msra.mxu0 0
    %211 = vmatprep.subr.bf16.mxu0 0
    %212 = vmatpush2.bf16.msra.mxu0 0
    %213 = vmatprep.subr.bf16.mxu0 0
    %214 = vmatpush2.bf16.msra.mxu0 0
    %215 = vmatprep.subr.bf16.mxu0 0
    %216 = vmatpush2.bf16.msra.mxu0 0
    %217 = vmatprep.mubr.bf16.mxu0 0
    %218 = vmatmul.mubr.bf16.gmra.mxu0 %v183
    %v219 = vpop.f32.mrf.mxu0
    %v220 = vadd.f32 %v155, %v219
    %v221 = vpop.f32.mrf.mxu0
    %v222 = vpop.f32.mrf.mxu0
    %v223 = vadd.f32 %v155, %v222
    %v224 = vpop.f32.mrf.mxu0
    %225 = vdwg.mxu0
    %226 = vst [vmem:[#allocation8] sm:$0xff] %v220
    %227 = vst [vmem:[#allocation8 + $0x8] sm:$0xff] %v223
    // Predicated region
    $region34: #{tpu_custom_call.1} parent=1 // pred_check
      _
    $region35: #{tpu_custom_call.1} parent=1 // pred_check_branch
      %229 = sbr.rel (0) target = $region37
    $region36: #{tpu_custom_call.1} parent=1 // pred_region
      %s231 = ssub.s32 256, 256
      %232 = vsyncadd [#allocation4], %s231
      %s233 = sshll.u32 [#allocation8], 4
      %s234 = int_to_ptr.vmem [resolvable:$true] %s233
      %239 = dma.vmem_to_hbm [thread:$0]  %s234, 256, %s5, [#allocation4], 128, 128, 8
    $region37: #{tpu_custom_call.1} parent=1 // pred_fallthru
      _
    // Predicated region
    $region38: #{tpu_custom_call.1} parent=1 // pred_check
      _
    $region39: #{tpu_custom_call.1} parent=1 // pred_check_branch
      %241 = sbr.rel (0) target = $region41
    $region40: #{tpu_custom_call.1} parent=1 // pred_region
      %242 = dma.done [#allocation4], 256
    $region41: #{tpu_custom_call.1} parent=1 // pred_fallthru
      _
    %243 = vsyncpa [#allocation3], 1
    %244 = vsyncpa [#allocation6], 1
    %245 = vsyncpa [#allocation4], 1

</llo_original>
